<compile_context>
chip_gen: v7x
topology: tpu7x:2x2x1
jax: 0.10.0
libtpu: 0.0.40
codegen_flags: <defaults>
</compile_context>

<pallas_src>
import math

import jax
import jax.numpy as jnp
from jax import lax
from jax.experimental import pallas as pl
from jax.experimental.pallas import tpu as pltpu

# --- constants from the PyTorch reference ------------------------------------
T_USE = 4                                   # Medium integrates the first 4 frames
SIG_SHOT_MIN, SIG_SHOT_MAX = 0.0001, 0.01
SIG_READ_MIN, SIG_READ_MAX = 0.001, 0.03
# measurement / exp_time * (exp_time / 8)  ==  measurement / 8  (cancels exactly)
POST_SCALE = 0.125

_MAX_TILE_ELEMS = 512 * 1024                # ~20 MiB double-buffered for f32 video
_GOLDEN = 0x9E3779B9
_TWO_PI = 2.0 * math.pi
_INV_2_23 = 1.0 / float(1 << 23)


def _mix32(x):
    """lowbias32-style integer mixer on uint32 vectors (pure VPU int ops)."""
    x = x ^ (x >> jnp.uint32(16))
    x = x * jnp.uint32(0x7FEB352D)
    x = x ^ (x >> jnp.uint32(15))
    x = x * jnp.uint32(0x846CA68B)
    x = x ^ (x >> jnp.uint32(16))
    return x


def _uniform_open01(bits_u32):
    """Top 23 bits -> float32 uniform in (0, 1] (safe for log)."""
    u = ((bits_u32 >> jnp.uint32(9)).astype(jnp.int32) + 1).astype(jnp.float32)
    return u * jnp.float32(_INV_2_23)


def _medium_shutter_kernel(seed_ref, sig_ref, video_ref, out_ref):
    """One (batch, H-tile, W-tile) grid step.

    seed_ref  : (1,) int32 in SMEM (scalar prefetch)
    sig_ref   : (2,) f32   in SMEM (scalar prefetch): [sig_shot, sig_read]
    video_ref : (1, T_USE, tH, tW) input block (native dtype)
    out_ref   : (1, 1, tH, tW) measurement block (same dtype as input)
    """
    b = pl.program_id(0)
    i = pl.program_id(1)
    j = pl.program_id(2)
    tH, tW = out_ref.shape[-2], out_ref.shape[-1]
    H = pl.num_programs(1) * tH
    W = pl.num_programs(2) * tW

    # Per-frame accumulation in f32: avoids a (1, 4, tH, tW) f32 temporary.
    m = video_ref[0, 0].astype(jnp.float32)
    for t in range(1, T_USE):
        m = m + video_ref[0, t].astype(jnp.float32)
    m = m * jnp.float32(POST_SCALE)           # folded /4 * (4/8)

    # ---- counter-based per-element Gaussian noise (no HBM noise tensors) ----
    # TODO(synk): cannot reproduce torch.randn's exact bitstream; the noise
    # matches the reference in distribution only.
    rows = lax.broadcasted_iota(jnp.int32, (tH, tW), 0) + i * tH
    cols = lax.broadcasted_iota(jnp.int32, (tH, tW), 1) + j * tW
    lin = (b * H + rows) * W + cols            # global element index (wraps, fine)
    base = lin.astype(jnp.uint32) + seed_ref[0].astype(jnp.uint32)
    u1 = _uniform_open01(_mix32(base))
    u2 = _uniform_open01(_mix32(base ^ jnp.uint32(_GOLDEN)))
    # Box-Muller -> one standard normal per element.
    n = jnp.sqrt(-2.0 * jnp.log(u1)) * jnp.cos(jnp.float32(_TWO_PI) * u2)

    sig_shot = sig_ref[0]
    sig_read = sig_ref[1]
    # shot + read noise fused: sqrt(m)*ss*N1 + sr*N2 ~ N(0, m*ss^2 + sr^2),
    # so one draw with the combined std is distribution-identical.
    std = jnp.sqrt(jnp.maximum(m, 0.0) * (sig_shot * sig_shot) + sig_read * sig_read)
    out = jnp.clip(m + std * n, 0.0, 1.0)
    out_ref[...] = out.reshape(out_ref.shape).astype(out_ref.dtype)


def _largest_divisor_tile(dim, align, cap):
    """Largest tile that divides `dim`, is a multiple of `align`, and <= cap.
    Falls back to the full dimension (always a legal block shape)."""
    if dim <= cap:
        return dim
    t = (cap // align) * align
    while t >= align:
        if dim % t == 0:
            return t
        t -= align
    return dim


def medium_shutter_forward(video, key, *, test=False):
    """Forward pass of the `Medium` shutter: sum of first 4 frames + noisy post-process."""
    B, T, H, W = video.shape
    if T < T_USE:
        raise ValueError(f"video needs at least {T_USE} frames, got {T}")

    k_seed, k_shot, k_read = jax.random.split(key, 3)
    if test:
        sig_shot = jnp.asarray((SIG_SHOT_MAX - SIG_SHOT_MIN) / 2, jnp.float32)
        sig_read = jnp.asarray((SIG_READ_MAX - SIG_READ_MIN) / 2, jnp.float32)
    else:
        sig_shot = (SIG_SHOT_MIN - SIG_SHOT_MAX) * jax.random.uniform(
            k_shot, dtype=jnp.float32) + SIG_SHOT_MAX
        sig_read = (SIG_READ_MIN - SIG_READ_MAX) * jax.random.uniform(
            k_read, dtype=jnp.float32) + SIG_READ_MAX
    sigs = jnp.stack([sig_shot, sig_read]).astype(jnp.float32)        # (2,) -> SMEM
    seeds = jax.random.randint(k_seed, (1,), 0, jnp.iinfo(jnp.int32).max,
                               dtype=jnp.int32)                       # (1,) -> SMEM

    # Lane-dense, DMA-friendly tiles:
    #   * prefer the full W (contiguous (tH x W) slabs per frame / per output row),
    #   * tH aligned to the packed-sublane multiple for the dtype (8/16/32),
    #   * total tile element budget keeps double-buffered VMEM ~20 MiB (f32).
    itemsize = jnp.dtype(video.dtype).itemsize
    align_h = max(8, 32 // itemsize)
    tW = _largest_divisor_tile(W, 128, 2048)
    row_cap = max(align_h, (_MAX_TILE_ELEMS // max(tW, 1)) // align_h * align_h)
    tH = _largest_divisor_tile(H, align_h, row_cap)
    grid = (B, H // tH, W // tW)

    grid_spec = pltpu.PrefetchScalarGridSpec(
        num_scalar_prefetch=2,
        grid=grid,
        in_specs=[
            # Only the first T_USE frames are fetched (T block index pinned to 0).
            pl.BlockSpec((1, T_USE, tH, tW),
                         lambda b, i, j, seed, sig: (b, 0, i, j)),
        ],
        out_specs=pl.BlockSpec((1, 1, tH, tW),
                               lambda b, i, j, seed, sig: (b, 0, i, j)),
    )

    return pl.pallas_call(
        _medium_shutter_kernel,
        out_shape=jax.ShapeDtypeStruct((B, 1, H, W), video.dtype),
        grid_spec=grid_spec,
        compiler_params=pltpu.CompilerParams(
            dimension_semantics=("parallel", "parallel", "parallel"),
            vmem_limit_bytes=48 * 1024 * 1024,
        ),
    )(seeds, sigs, video)


if __name__ == "__main__":
    key = jax.random.PRNGKey(0)
    k_video, k_fwd = jax.random.split(key)

    # Small but lane-aligned demo shapes: (B, T, H, W) with T >= 4 frames.
    B, T, H, W = 2, 8, 32, 128
    video = jax.random.uniform(k_video, (B, T, H, W), dtype=jnp.float32)

    out = medium_shutter_forward(video, k_fwd, test=True)
    out = jax.block_until_ready(out)

    assert out.shape == (B, 1, H, W), out.shape
    assert bool(jnp.isfinite(out).all())
    # Noise-free reference: clamp(sum(video[:, :4]) / 8, 0, 1); noise std <~ 0.016.
    ref = jnp.clip(jnp.sum(video[:, :T_USE], axis=1, keepdims=True) * POST_SCALE, 0.0, 1.0)
    max_err = float(jnp.max(jnp.abs(out - ref)))
    assert max_err < 0.25, f"output deviates from clean measurement by {max_err}"

    print("KERNEL_OK")
</pallas_src>

<mosaic_0001>
module attributes {stable_mosaic.version = 11 : i64} {
  func.func @_medium_shutter_kernel(%arg0: i32, %arg1: i32, %arg2: i32, %arg3: memref<1xi32, #tpu.memory_space<smem>>, %arg4: memref<2xf32, #tpu.memory_space<smem>>, %arg5: memref<1x4x32x128xf32, #tpu.memory_space<vmem>>, %arg6: memref<1x1x32x128xf32, #tpu.memory_space<vmem>>) attributes {dimension_semantics = [#tpu.dimension_semantics<parallel>, #tpu.dimension_semantics<parallel>, #tpu.dimension_semantics<parallel>], iteration_bounds = array<i64: 2, 1, 1>, scalar_prefetch = 2 : i64, scratch_operands = 0 : i64, tpu.core_type = #tpu.core_type<tc>, window_params = [{transform_indices = @transform_0, window_bounds = array<i64: 1, 4, 32, 128>}, {transform_indices = @transform_1, window_bounds = array<i64: 1, 1, 32, 128>}]} {
    %c0 = arith.constant 0 : index
    %c0_0 = arith.constant 0 : index
    %c0_1 = arith.constant 0 : index
    %c0_2 = arith.constant 0 : index
    %0 = vector.load %arg5[%c0, %c0_0, %c0_1, %c0_2] : memref<1x4x32x128xf32, #tpu.memory_space<vmem>>, vector<1x1x32x128xf32>
    %1 = vector.shape_cast %0 : vector<1x1x32x128xf32> to vector<32x128xf32>
    %c0_3 = arith.constant 0 : index
    %c1 = arith.constant 1 : index
    %c0_4 = arith.constant 0 : index
    %c0_5 = arith.constant 0 : index
    %2 = vector.load %arg5[%c0_3, %c1, %c0_4, %c0_5] : memref<1x4x32x128xf32, #tpu.memory_space<vmem>>, vector<1x1x32x128xf32>
    %3 = vector.shape_cast %2 : vector<1x1x32x128xf32> to vector<32x128xf32>
    %4 = arith.addf %1, %3 : vector<32x128xf32>
    %c0_6 = arith.constant 0 : index
    %c2 = arith.constant 2 : index
    %c0_7 = arith.constant 0 : index
    %c0_8 = arith.constant 0 : index
    %5 = vector.load %arg5[%c0_6, %c2, %c0_7, %c0_8] : memref<1x4x32x128xf32, #tpu.memory_space<vmem>>, vector<1x1x32x128xf32>
    %6 = vector.shape_cast %5 : vector<1x1x32x128xf32> to vector<32x128xf32>
    %7 = arith.addf %4, %6 : vector<32x128xf32>
    %c0_9 = arith.constant 0 : index
    %c3 = arith.constant 3 : index
    %c0_10 = arith.constant 0 : index
    %c0_11 = arith.constant 0 : index
    %8 = vector.load %arg5[%c0_9, %c3, %c0_10, %c0_11] : memref<1x4x32x128xf32, #tpu.memory_space<vmem>>, vector<1x1x32x128xf32>
    %9 = vector.shape_cast %8 : vector<1x1x32x128xf32> to vector<32x128xf32>
    %10 = arith.addf %7, %9 : vector<32x128xf32>
    %cst = arith.constant 1.250000e-01 : f32
    %11 = vector.broadcast %cst : f32 to vector<32x128xf32>
    %12 = arith.mulf %10, %11 : vector<32x128xf32>
    %13 = tpu.iota {dimensions = array<i32: 0>} : vector<32x128xi32>
    %c32_i32 = arith.constant 32 : i32
    %14 = arith.muli %arg1, %c32_i32 : i32
    %15 = vector.broadcast %14 : i32 to vector<32x128xi32>
    %16 = arith.addi %13, %15 : vector<32x128xi32>
    %17 = tpu.iota {dimensions = array<i32: 1>} : vector<32x128xi32>
    %c128_i32 = arith.constant 128 : i32
    %18 = arith.muli %arg2, %c128_i32 : i32
    %19 = vector.broadcast %18 : i32 to vector<32x128xi32>
    %20 = arith.addi %17, %19 : vector<32x128xi32>
    %c32_i32_12 = arith.constant 32 : i32
    %21 = arith.muli %arg0, %c32_i32_12 : i32
    %22 = vector.broadcast %21 : i32 to vector<32x128xi32>
    %23 = arith.addi %22, %16 : vector<32x128xi32>
    %c128_i32_13 = arith.constant 128 : i32
    %24 = vector.broadcast %c128_i32_13 : i32 to vector<32x128xi32>
    %25 = arith.muli %23, %24 : vector<32x128xi32>
    %26 = arith.addi %25, %20 : vector<32x128xi32>
    %c0_14 = arith.constant 0 : index
    %27 = memref.load %arg3[%c0_14] : memref<1xi32, #tpu.memory_space<smem>>
    %28 = vector.broadcast %27 : i32 to vector<32x128xi32>
    %29 = arith.addi %26, %28 : vector<32x128xi32>
    %c16_i32 = arith.constant 16 : i32
    %30 = vector.broadcast %c16_i32 : i32 to vector<32x128xi32>
    %31 = arith.shrui %29, %30 : vector<32x128xi32>
    %32 = arith.xori %29, %31 : vector<32x128xi32>
    %c2146121005_i32 = arith.constant 2146121005 : i32
    %33 = vector.broadcast %c2146121005_i32 : i32 to vector<32x128xi32>
    %34 = arith.muli %32, %33 : vector<32x128xi32>
    %c15_i32 = arith.constant 15 : i32
    %35 = vector.broadcast %c15_i32 : i32 to vector<32x128xi32>
    %36 = arith.shrui %34, %35 : vector<32x128xi32>
    %37 = arith.xori %34, %36 : vector<32x128xi32>
    %c-2073254261_i32 = arith.constant -2073254261 : i32
    %38 = vector.broadcast %c-2073254261_i32 : i32 to vector<32x128xi32>
    %39 = arith.muli %37, %38 : vector<32x128xi32>
    %c16_i32_15 = arith.constant 16 : i32
    %40 = vector.broadcast %c16_i32_15 : i32 to vector<32x128xi32>
    %41 = arith.shrui %39, %40 : vector<32x128xi32>
    %42 = arith.xori %39, %41 : vector<32x128xi32>
    %c9_i32 = arith.constant 9 : i32
    %43 = vector.broadcast %c9_i32 : i32 to vector<32x128xi32>
    %44 = arith.shrui %42, %43 : vector<32x128xi32>
    %c1_i32 = arith.constant 1 : i32
    %45 = vector.broadcast %c1_i32 : i32 to vector<32x128xi32>
    %46 = arith.addi %44, %45 : vector<32x128xi32>
    %47 = arith.sitofp %46 : vector<32x128xi32> to vector<32x128xf32>
    %cst_16 = arith.constant 1.1920929E-7 : f32
    %48 = vector.broadcast %cst_16 : f32 to vector<32x128xf32>
    %49 = arith.mulf %47, %48 : vector<32x128xf32>
    %c-1640531527_i32 = arith.constant -1640531527 : i32
    %50 = vector.broadcast %c-1640531527_i32 : i32 to vector<32x128xi32>
    %51 = arith.xori %29, %50 : vector<32x128xi32>
    %c16_i32_17 = arith.constant 16 : i32
    %52 = vector.broadcast %c16_i32_17 : i32 to vector<32x128xi32>
    %53 = arith.shrui %51, %52 : vector<32x128xi32>
    %54 = arith.xori %51, %53 : vector<32x128xi32>
    %c2146121005_i32_18 = arith.constant 2146121005 : i32
    %55 = vector.broadcast %c2146121005_i32_18 : i32 to vector<32x128xi32>
    %56 = arith.muli %54, %55 : vector<32x128xi32>
    %c15_i32_19 = arith.constant 15 : i32
    %57 = vector.broadcast %c15_i32_19 : i32 to vector<32x128xi32>
    %58 = arith.shrui %56, %57 : vector<32x128xi32>
    %59 = arith.xori %56, %58 : vector<32x128xi32>
    %c-2073254261_i32_20 = arith.constant -2073254261 : i32
    %60 = vector.broadcast %c-2073254261_i32_20 : i32 to vector<32x128xi32>
    %61 = arith.muli %59, %60 : vector<32x128xi32>
    %c16_i32_21 = arith.constant 16 : i32
    %62 = vector.broadcast %c16_i32_21 : i32 to vector<32x128xi32>
    %63 = arith.shrui %61, %62 : vector<32x128xi32>
    %64 = arith.xori %61, %63 : vector<32x128xi32>
    %c9_i32_22 = arith.constant 9 : i32
    %65 = vector.broadcast %c9_i32_22 : i32 to vector<32x128xi32>
    %66 = arith.shrui %64, %65 : vector<32x128xi32>
    %c1_i32_23 = arith.constant 1 : i32
    %67 = vector.broadcast %c1_i32_23 : i32 to vector<32x128xi32>
    %68 = arith.addi %66, %67 : vector<32x128xi32>
    %69 = arith.sitofp %68 : vector<32x128xi32> to vector<32x128xf32>
    %cst_24 = arith.constant 1.1920929E-7 : f32
    %70 = vector.broadcast %cst_24 : f32 to vector<32x128xf32>
    %71 = arith.mulf %69, %70 : vector<32x128xf32>
    %72 = math.log %49 : vector<32x128xf32>
    %cst_25 = arith.constant -2.000000e+00 : f32
    %73 = vector.broadcast %cst_25 : f32 to vector<32x128xf32>
    %74 = arith.mulf %73, %72 : vector<32x128xf32>
    %75 = math.sqrt %74 : vector<32x128xf32>
    %cst_26 = arith.constant 6.28318548 : f32
    %76 = vector.broadcast %cst_26 : f32 to vector<32x128xf32>
    %77 = arith.mulf %76, %71 : vector<32x128xf32>
    %78 = math.cos %77 : vector<32x128xf32>
    %79 = arith.mulf %75, %78 : vector<32x128xf32>
    %c0_27 = arith.constant 0 : index
    %80 = memref.load %arg4[%c0_27] : memref<2xf32, #tpu.memory_space<smem>>
    %c1_28 = arith.constant 1 : index
    %81 = memref.load %arg4[%c1_28] : memref<2xf32, #tpu.memory_space<smem>>
    %cst_29 = arith.constant 0.000000e+00 : f32
    %82 = vector.broadcast %cst_29 : f32 to vector<32x128xf32>
    %83 = arith.maximumf %12, %82 : vector<32x128xf32>
    %84 = arith.mulf %80, %80 : f32
    %85 = vector.broadcast %84 : f32 to vector<32x128xf32>
    %86 = arith.mulf %83, %85 : vector<32x128xf32>
    %87 = arith.mulf %81, %81 : f32
    %88 = vector.broadcast %87 : f32 to vector<32x128xf32>
    %89 = arith.addf %86, %88 : vector<32x128xf32>
    %90 = math.sqrt %89 : vector<32x128xf32>
    %91 = arith.mulf %90, %79 : vector<32x128xf32>
    %92 = arith.addf %12, %91 : vector<32x128xf32>
    %cst_30 = arith.constant 0.000000e+00 : f32
    %cst_31 = arith.constant 1.000000e+00 : f32
    %93 = vector.broadcast %cst_30 : f32 to vector<32x128xf32>
    %94 = arith.maximumf %93, %92 : vector<32x128xf32>
    %95 = vector.broadcast %cst_31 : f32 to vector<32x128xf32>
    %96 = arith.minimumf %95, %94 : vector<32x128xf32>
    %97 = vector.shape_cast %96 : vector<32x128xf32> to vector<1x1x32x128xf32>
    %c0_32 = arith.constant 0 : index
    %c0_33 = arith.constant 0 : index
    %c0_34 = arith.constant 0 : index
    %c0_35 = arith.constant 0 : index
    %98 = vector.load %arg6[%c0_32, %c0_33, %c0_34, %c0_35] : memref<1x1x32x128xf32, #tpu.memory_space<vmem>>, vector<1x1x32x128xf32>
    tpu.vector_store %arg6[%c0_32, %c0_33, %c0_34, %c0_35], %97 {strides = array<i32>} : memref<1x1x32x128xf32, #tpu.memory_space<vmem>>, vector<1x1x32x128xf32>,
    return
  }
  func.func @transform_0(%arg0: i32, %arg1: i32, %arg2: i32, %arg3: memref<1xi32, #tpu.memory_space<smem>>, %arg4: memref<2xf32, #tpu.memory_space<smem>>) -> (i32, i32, i32, i32) {
    %c0_i32 = arith.constant 0 : i32
    %c0_i32_0 = arith.constant 0 : i32
    return %arg0, %c0_i32, %arg1, %arg2 : i32, i32, i32, i32
  }
  func.func @transform_1(%arg0: i32, %arg1: i32, %arg2: i32, %arg3: memref<1xi32, #tpu.memory_space<smem>>, %arg4: memref<2xf32, #tpu.memory_space<smem>>) -> (i32, i32, i32, i32) {
    %c0_i32 = arith.constant 0 : i32
    %c0_i32_0 = arith.constant 0 : i32
    return %arg0, %c0_i32, %arg1, %arg2 : i32, i32, i32, i32
  }
}

</mosaic_0001>

<llo_original>
// kernel: tpu_custom_call.1
$region0: #{tpu_custom_call.1}
  #allocation0 [shape = 'u32[]', space=smem, size = 0x4, offset = 0x4, fixed_abs, tag = 'smem constant byte address 0x4 - core index']
  #allocation1 [shape = 'u32[144,128]{1,0:T(1,128)}', space=vmem, size = 0x12000, scoped, tag = 'internal scratch']
  #allocation2 [shape = 's32[1]{0}', space=sflag, size = 0x4, scoped, tag = 'scoped memory for tpu_custom_call.1']
  #allocation3 [shape = 's32[1]{0:T(128)S(6)}', space=smem, size = 0x200, scoped, tag = 'prefetched SMEM operand 0']
  #allocation4 [shape = 'u8[512]{0}', space=smem, size = 0x200, scoped, tag = 'prefetched SMEM operand 1']
  %s0 = inlined_call_operand.<no memory space> [shape: s32[1], index: 0, kind: input, shape index: {}]
  %s1 = inlined_call_operand.vmem [shape: f32[2], index: 1, kind: input, shape index: {}]
  %s2 = inlined_call_operand.hbm [shape: f32[2,8,32,128], index: 2, kind: input, shape index: {}]
  %s3 = inlined_call_operand.hbm [shape: f32[2,1,32,128], index: 3, kind: output, shape index: {}]
  %s4 = sld [smem:[#allocation0]]
  $region41: #{tpu_custom_call.1} parent=0
    _
  %s6 = ssub.s32 1, %s4
  %s7 = scalar_select 0, %s6, %s4
  %8 = sst [smem:[#allocation3]] %s0
  %s9 = sshll.u32 %s1, 4
  %s10 = int_to_ptr.vmem [resolvable:$true] %s9
  %12 = dma.vmem_to_smem %s10, 16, [#allocation4], [#allocation2]
  %13 = dma.done [#allocation2], 16
  %14 = sfence
  $region1: #{tpu_custom_call.1} parent=0
    #allocation5 [shape = 'u8[131072]{0}', space=vmem, size = 0x20000, scoped, tag = 'input window, operand 2']
    #allocation6 [shape = 's32[2]{0}', space=sflag, size = 0x8, scoped, tag = 'scoped memory for tpu_custom_call.1']
    #allocation7 [shape = 's32[2]{0}', space=sflag, size = 0x8, scoped, tag = 'scoped memory for tpu_custom_call.1']
    #allocation8 [shape = 'u8[32768]{0}', space=vmem, size = 0x8000, scoped, tag = 'output window, operand 0']
    %15 = vsyncpa [#allocation6], 0
    %s16 = scalar_lea.sflag [#allocation6], 1
    %17 = vsyncpa %s16, 0
    %18 = vsyncpa [#allocation7], 0
    %s19 = scalar_lea.sflag [#allocation7], 1
    %20 = vsyncpa %s19, 0
    loop: start=0, step=1, limit=4
    $region2: #{tpu_custom_call.1} parent=1 // loop_pre_header
      _
    $region3: #{tpu_custom_call.1} parent=1 // loop_header
      %s22 = sphi 0, %s26
      %p23 = scmp.ge.s32.totalorder %s22, 4
      %s29 = sphi 0, %s48
      %s30 = sphi 0, %s44
      %s31 = sphi 0, %s40
      %s32 = sphi 0, %s29
      %s33 = sphi 0, %s30
      %s34 = sphi 0, %s31
      %s35 = sphi 0, %s32
      %s36 = sphi 0, %s33
      %s37 = sphi 0, %s34
      %s55 = sphi 0, %s57
      %s58 = sphi 0, %s55
      %s59 = sphi 0, %s58
      %s75 = sphi 0, %s59
      %s85 = sphi 0, %s87
      %s88 = sphi 0, %s85
      %s89 = sphi 0, %s88
      %s105 = sphi 0, %s89
    $region4: #{tpu_custom_call.1} parent=1 // loop_header_branch
      %25 = sbr.rel (%p23) target = $region8
    $region5: #{tpu_custom_call.1} parent=1 // loop_body
      %s27 = ssub.s32 %s22, 1
      %s28 = ssub.s32 %s22, 2
      %s38 = sadd.s32 1, %s31
      %p39 = scmp.ge.s32.totalorder %s38, 1
      %s40 = scalar_select %p39, 0, %s38
      %s41 = sadd.s32 1, %s30
      %s42 = scalar_select %p39, %s41, %s30
      %p43 = scmp.ge.s32.totalorder %s42, 1
      %s44 = scalar_select %p43, 0, %s42
      %s45 = sadd.s32 1, %s29
      %s46 = scalar_select %p43, %s45, %s29
      %p47 = scmp.ge.s32.totalorder %s46, 2
      %s48 = scalar_select %p47, 0, %s46
      %s49 = ssub.s32 %s29, %s48
      %s50 = ssub.s32 %s30, %s44
      %s51 = sor.u32 %s49, %s50
      %s52 = ssub.s32 %s31, %s40
      %s53 = sor.u32 %s51, %s52
      %p54 = scmp.eq.s32.totalorder %s53, 0
      %s56 = sadd.s32 %s55, 1
      %s57 = scalar_select %p54, %s55, %s56
      %p60 = pneg %p54
      %p61 = scmp.eq.s32.totalorder %s22, 1
      %p62 = por %p60, %p61
      %p63 = scmp.ne.s32.totalorder %s55, %s58
      %p64 = scmp.eq.s32.totalorder %s22, 0
      %p65 = por %p63, %p64
      %p66 = scmp.ne.s32.totalorder %s55, %s58
      %p67 = scmp.eq.s32.totalorder %s27, 1
      %p68 = por %p66, %p67
      %p69 = scmp.ne.s32.totalorder %s58, %s59
      %p70 = scmp.eq.s32.totalorder %s27, 0
      %p71 = por %p69, %p70
      %p72 = scmp.ne.s32.totalorder %s58, %s59
      %p73 = scmp.eq.s32.totalorder %s28, 1
      %p74 = por %p72, %p73
      %p76 = scmp.ne.s32.totalorder %s59, %s75
      %p77 = scmp.eq.s32.totalorder %s28, 0
      %p78 = por %p76, %p77
      %s79 = ssub.s32 %s29, %s48
      %s80 = ssub.s32 %s30, %s44
      %s81 = sor.u32 %s79, %s80
      %s82 = ssub.s32 %s31, %s40
      %s83 = sor.u32 %s81, %s82
      %p84 = scmp.eq.s32.totalorder %s83, 0
      %s86 = sadd.s32 %s85, 1
      %s87 = scalar_select %p84, %s85, %s86
      %p90 = pneg %p84
      %p91 = scmp.eq.s32.totalorder %s22, 1
      %p92 = por %p90, %p91
      %p93 = scmp.ne.s32.totalorder %s85, %s88
      %p94 = scmp.eq.s32.totalorder %s22, 0
      %p95 = por %p93, %p94
      %p96 = scmp.ne.s32.totalorder %s85, %s88
      %p97 = scmp.eq.s32.totalorder %s27, 1
      %p98 = por %p96, %p97
      %p99 = scmp.ne.s32.totalorder %s88, %s89
      %p100 = scmp.eq.s32.totalorder %s27, 0
      %p101 = por %p99, %p100
      %p102 = scmp.ne.s32.totalorder %s88, %s89
      %p103 = scmp.eq.s32.totalorder %s28, 1
      %p104 = por %p102, %p103
      %p106 = scmp.ne.s32.totalorder %s89, %s105
      %p107 = scmp.eq.s32.totalorder %s28, 0
      %p108 = por %p106, %p107
      %p109 = scmp.le.s32.totalorder 1, %s22
      %p110 = scmp.lt.s32.totalorder %s22, 3
      %p111 = pnand %p109, %p110
      %p112 = pneg %p111
      // Predicated region
      $region9: #{tpu_custom_call.1} parent=5 // pred_check
        _
      $region10: #{tpu_custom_call.1} parent=5 // pred_check_branch
        %114 = sbr.rel (%p111) target = $region12
      $region11: #{tpu_custom_call.1} parent=5 // pred_region
        %s115 = ssub.s32 %s22, 1
      $region12: #{tpu_custom_call.1} parent=5 // pred_fallthru
        _
      %p116 = scmp.lt.s32.totalorder %s22, 2
      // Predicated region
      $region13: #{tpu_custom_call.1} parent=5 // pred_check
        %p117 = pneg %p116
      $region14: #{tpu_custom_call.1} parent=5 // pred_check_branch
        %119 = sbr.rel (%p117) target = $region16
      $region15: #{tpu_custom_call.1} parent=5 // pred_region
        // Predicated region
        $region17: #{tpu_custom_call.1} parent=15 // pred_check
          %p120 = pneg %p65
        $region18: #{tpu_custom_call.1} parent=15 // pred_check_branch
          %122 = sbr.rel (%p120) target = $region20
        $region19: #{tpu_custom_call.1} parent=15 // pred_region
          %s123 = sand.u32 %s55, 1
          %s124 = scalar_lea.sflag [#allocation6], %s123
          %s125 = sand.u32 %s55, 1
          %s126 = smul.addr %s125, 128
          %s127 = scalar_lea.vmem [#allocation5], %s126
          %s128 = smul.u32 4, %s30
          %s130 = ssub.s32 2048, 2048
          %131 = vsyncadd %s124, %s130
          %s132 = sadd.s32 %s31, %s128
          %s133 = smul.addr %s29, 32
          %s134 = sadd.s32 %s132, %s133
          %s135 = smul.addr %s134, 128
          %s136 = scalar_lea.hbm %s2, %s135
          %s137 = sshll.u32 %s127, 4
          %s138 = int_to_ptr.vmem [resolvable:$true] %s137
          %143 = dma.hbm_to_vmem [thread:$0]  %s136, 2048, %s138, %s124, 128, 128, 8
        $region20: #{tpu_custom_call.1} parent=15 // pred_fallthru
          _
      $region16: #{tpu_custom_call.1} parent=5 // pred_fallthru
        _
      %p144 = scmp.le.s32.totalorder 1, %s22
      %p145 = scmp.lt.s32.totalorder %s22, 3
      %p146 = pnand %p144, %p145
      %p147 = pneg %p146
      // Predicated region
      $region21: #{tpu_custom_call.1} parent=5 // pred_check
        _
      $region22: #{tpu_custom_call.1} parent=5 // pred_check_branch
        %149 = sbr.rel (%p146) target = $region24
      $region23: #{tpu_custom_call.1} parent=5 // pred_region
        %s150 = ssub.s32 %s22, 1
        %s151 = sand.u32 %s58, 1
        %s152 = scalar_lea.sflag [#allocation6], %s151
        %s153 = sand.u32 %s58, 1
        %s154 = smul.addr %s153, 128
        %s155 = scalar_lea.vmem [#allocation5], %s154
        // Predicated region
        $region25: #{tpu_custom_call.1} parent=23 // pred_check
          %p156 = pneg %p71
        $region26: #{tpu_custom_call.1} parent=23 // pred_check_branch
          %158 = sbr.rel (%p156) target = $region28
        $region27: #{tpu_custom_call.1} parent=23 // pred_region
          %159 = dma.done %s152, 2048
        $region28: #{tpu_custom_call.1} parent=23 // pred_fallthru
          _
        %s160 = sand.u32 %s58, 1
        %s161 = scalar_lea.sflag [#allocation6], %s160
        %s162 = sand.u32 %s58, 1
        %s163 = smul.addr %s162, 128
        %s164 = scalar_lea.vmem [#allocation5], %s163
        %p165 = pneg %p71
        %p166 = pneg %p68
        %p167 = pneg %p101
        %p168 = pneg %p98
        %s169 = sand.u32 %s88, 1
        %s170 = scalar_lea.sflag [#allocation7], %s169
        %s171 = sand.u32 %s88, 1
        %s172 = smul.addr %s171, 32
        %s173 = scalar_lea.vmem [#allocation8], %s172
        %s174 = smul.u32 4, %s33
        %s175 = smul.u32 4, %s33
        %v176 = vld [vmem:[%s155] sm:$0xff]
        %v177 = vld [vmem:[%s155 + $0x8] sm:$0xff]
        %v178 = vld [vmem:[%s155 + $0x10] sm:$0xff]
        %v179 = vld [vmem:[%s155 + $0x18] sm:$0xff]
        %s180 = scalar_lea.vmem %s155, 32 [#allocation5]
        %v181 = vld [vmem:[%s180] sm:$0xff]
        %v182 = vld [vmem:[%s180 + $0x8] sm:$0xff]
        %v183 = vld [vmem:[%s180 + $0x10] sm:$0xff]
        %v184 = vld [vmem:[%s180 + $0x18] sm:$0xff]
        %v185 = vadd.f32 %v176, %v181
        %v186 = vadd.f32 %v177, %v182
        %v187 = vadd.f32 %v178, %v183
        %v188 = vadd.f32 %v179, %v184
        %s189 = scalar_lea.vmem %s155, 64 [#allocation5]
        %v190 = vld [vmem:[%s189] sm:$0xff]
        %v191 = vld [vmem:[%s189 + $0x8] sm:$0xff]
        %v192 = vld [vmem:[%s189 + $0x10] sm:$0xff]
        %v193 = vld [vmem:[%s189 + $0x18] sm:$0xff]
        %v194 = vadd.f32 %v185, %v190
        %v195 = vadd.f32 %v186, %v191
        %v196 = vadd.f32 %v187, %v192
        %v197 = vadd.f32 %v188, %v193
        %s198 = scalar_lea.vmem %s155, 96 [#allocation5]
        %v199 = vld [vmem:[%s198] sm:$0xff]
        %v200 = vld [vmem:[%s198 + $0x8] sm:$0xff]
        %v201 = vld [vmem:[%s198 + $0x10] sm:$0xff]
        %v202 = vld [vmem:[%s198 + $0x18] sm:$0xff]
        %v203 = vadd.f32 %v194, %v199
        %v204 = vadd.f32 %v195, %v200
        %v205 = vadd.f32 %v196, %v201
        %v206 = vadd.f32 %v197, %v202
        %v207 = vmul.f32 %v203, 0.125
        %v208 = vmul.f32 %v204, 0.125
        %v209 = vmul.f32 %v205, 0.125
        %v210 = vmul.f32 %v206, 0.125
        %v211 = vlaneseq
        %v212 = vshrl.u32 %v211, 7
        %v213 = vadd.s32 %v212, 8
        %v214 = vadd.s32 %v212, 16
        %v215 = vadd.s32 %v212, 24
        %s216 = smul.u32 %s33, 32
        %v217 = vstv %s216
        %v218 = vadd.s32 %v212, %v217
        %v219 = vadd.s32 %v213, %v217
        %v220 = vadd.s32 %v214, %v217
        %v221 = vadd.s32 %v215, %v217
        %v222 = vlaneseq
        %v223 = vand.u32 %v222, 127
        %s224 = smul.u32 %s34, 128
        %v225 = vstv %s224
        %v226 = vadd.s32 %v223, %v225
        %s227 = smul.u32 %s32, 32
        %v228 = vstv %s227
        %v229 = vadd.s32 %v228, %v218
        %v230 = vadd.s32 %v228, %v219
        %v231 = vadd.s32 %v228, %v220
        %v232 = vadd.s32 %v228, %v221
        %v233 = vmul.u32 %v229, 128
        %v234 = vmul.u32 %v230, 128
        %v235 = vmul.u32 %v231, 128
        %v236 = vmul.u32 %v232, 128
        %v237 = vadd.s32 %v233, %v226
        %v238 = vadd.s32 %v234, %v226
        %v239 = vadd.s32 %v235, %v226
        %v240 = vadd.s32 %v236, %v226
        %s241 = sld [smem:[#allocation3]]
        %v242 = vstv %s241
        %v243 = vadd.s32 %v237, %v242
        %v244 = vadd.s32 %v238, %v242
        %v245 = vadd.s32 %v239, %v242
        %v246 = vadd.s32 %v240, %v242
        %v247 = vshrl.u32 %v243, 16
        %v248 = vshrl.u32 %v244, 16
        %v249 = vshrl.u32 %v245, 16
        %v250 = vshrl.u32 %v246, 16
        %v251 = vxor.u32 %v243, %v247
        %v252 = vxor.u32 %v244, %v248
        %v253 = vxor.u32 %v245, %v249
        %v254 = vxor.u32 %v246, %v250
        %v255 = vmul.u32 %v251, 2146121005
        %v256 = vmul.u32 %v252, 2146121005
        %v257 = vmul.u32 %v253, 2146121005
        %v258 = vmul.u32 %v254, 2146121005
        %v259 = vshrl.u32 %v255, 15
        %v260 = vshrl.u32 %v256, 15
        %v261 = vshrl.u32 %v257, 15
        %v262 = vshrl.u32 %v258, 15
        %v263 = vxor.u32 %v255, %v259
        %v264 = vxor.u32 %v256, %v260
        %v265 = vxor.u32 %v257, %v261
        %v266 = vxor.u32 %v258, %v262
        %v267 = vmul.u32 %v263, 2221713035
        %v268 = vmul.u32 %v264, 2221713035
        %v269 = vmul.u32 %v265, 2221713035
        %v270 = vmul.u32 %v266, 2221713035
        %v271 = vshrl.u32 %v267, 16
        %v272 = vshrl.u32 %v268, 16
        %v273 = vshrl.u32 %v269, 16
        %v274 = vshrl.u32 %v270, 16
        %v275 = vxor.u32 %v267, %v271
        %v276 = vxor.u32 %v268, %v272
        %v277 = vxor.u32 %v269, %v273
        %v278 = vxor.u32 %v270, %v274
        %v279 = vshrl.u32 %v275, 9
        %v280 = vshrl.u32 %v276, 9
        %v281 = vshrl.u32 %v277, 9
        %v282 = vshrl.u32 %v278, 9
        %v283 = vadd.s32 %v279, 1
        %v284 = vadd.s32 %v280, 1
        %v285 = vadd.s32 %v281, 1
        %v286 = vadd.s32 %v282, 1
        %v287 = vcvt.s32.f32 %v283
        %v288 = vcvt.s32.f32 %v284
        %v289 = vcvt.s32.f32 %v285
        %v290 = vcvt.s32.f32 %v286
        %v291 = vmul.f32 %v287, 1.1920929e-07
        %v292 = vmul.f32 %v288, 1.1920929e-07
        %v293 = vmul.f32 %v289, 1.1920929e-07
        %v294 = vmul.f32 %v290, 1.1920929e-07
        %v295 = vxor.u32 %v243, 2654435769
        %v296 = vxor.u32 %v244, 2654435769
        %v297 = vxor.u32 %v245, 2654435769
        %v298 = vxor.u32 %v246, 2654435769
        %v299 = vshrl.u32 %v295, 16
        %v300 = vshrl.u32 %v296, 16
        %v301 = vshrl.u32 %v297, 16
        %v302 = vshrl.u32 %v298, 16
        %v303 = vxor.u32 %v295, %v299
        %v304 = vxor.u32 %v296, %v300
        %v305 = vxor.u32 %v297, %v301
        %v306 = vxor.u32 %v298, %v302
        %v307 = vmul.u32 %v303, 2146121005
        %v308 = vmul.u32 %v304, 2146121005
        %v309 = vmul.u32 %v305, 2146121005
        %v310 = vmul.u32 %v306, 2146121005
        %v311 = vshrl.u32 %v307, 15
        %v312 = vshrl.u32 %v308, 15
        %v313 = vshrl.u32 %v309, 15
        %v314 = vshrl.u32 %v310, 15
        %v315 = vxor.u32 %v307, %v311
        %v316 = vxor.u32 %v308, %v312
        %v317 = vxor.u32 %v309, %v313
        %v318 = vxor.u32 %v310, %v314
        %v319 = vmul.u32 %v315, 2221713035
        %v320 = vmul.u32 %v316, 2221713035
        %v321 = vmul.u32 %v317, 2221713035
        %v322 = vmul.u32 %v318, 2221713035
        %v323 = vshrl.u32 %v319, 16
        %v324 = vshrl.u32 %v320, 16
        %v325 = vshrl.u32 %v321, 16
        %v326 = vshrl.u32 %v322, 16
        %v327 = vxor.u32 %v319, %v323
        %v328 = vxor.u32 %v320, %v324
        %v329 = vxor.u32 %v321, %v325
        %v330 = vxor.u32 %v322, %v326
        %v331 = vshrl.u32 %v327, 9
        %v332 = vshrl.u32 %v328, 9
        %v333 = vshrl.u32 %v329, 9
        %v334 = vshrl.u32 %v330, 9
        %v335 = vadd.s32 %v331, 1
        %v336 = vadd.s32 %v332, 1
        %v337 = vadd.s32 %v333, 1
        %v338 = vadd.s32 %v334, 1
        %v339 = vcvt.s32.f32 %v335
        %v340 = vcvt.s32.f32 %v336
        %v341 = vcvt.s32.f32 %v337
        %v342 = vcvt.s32.f32 %v338
        %v343 = vmul.f32 %v339, 1.1920929e-07
        %v344 = vmul.f32 %v340, 1.1920929e-07
        %v345 = vmul.f32 %v341, 1.1920929e-07
        %v346 = vmul.f32 %v342, 1.1920929e-07
        %v347 = vlog2.pop %v291
        %v348 = vmul.f32 %v347, 0.6931472
        %v349 = vlog2.pop %v292
        %v350 = vmul.f32 %v349, 0.6931472
        %v351 = vlog2.pop %v293
        %v352 = vmul.f32 %v351, 0.6931472
        %v353 = vlog2.pop %v294
        %v354 = vmul.f32 %v353, 0.6931472
        %v355 = vmul.f32 %v348, -2.0
        %v356 = vmul.f32 %v350, -2.0
        %v357 = vmul.f32 %v352, -2.0
        %v358 = vmul.f32 %v354, -2.0
        %v359 = vrsqrt.pop %v355
        %v360 = vmul.f32 %v355, %v359
        %vm361 = vcmp.eq.f32.partialorder %v355, inf
        %v362 = vsel %vm361, %v355, %v360
        %vm363 = vcmp.eq.f32.partialorder %v355, 0.0
        %v364 = vand.u32 %v355, 2147483648
        %v365 = vsel %vm363, %v364, %v362
        %v366 = vrsqrt.pop %v356
        %v367 = vmul.f32 %v356, %v366
        %vm368 = vcmp.eq.f32.partialorder %v356, inf
        %v369 = vsel %vm368, %v356, %v367
        %vm370 = vcmp.eq.f32.partialorder %v356, 0.0
        %v371 = vand.u32 %v356, 2147483648
        %v372 = vsel %vm370, %v371, %v369
        %v373 = vrsqrt.pop %v357
        %v374 = vmul.f32 %v357, %v373
        %vm375 = vcmp.eq.f32.partialorder %v357, inf
        %v376 = vsel %vm375, %v357, %v374
        %vm377 = vcmp.eq.f32.partialorder %v357, 0.0
        %v378 = vand.u32 %v357, 2147483648
        %v379 = vsel %vm377, %v378, %v376
        %v380 = vrsqrt.pop %v358
        %v381 = vmul.f32 %v358, %v380
        %vm382 = vcmp.eq.f32.partialorder %v358, inf
        %v383 = vsel %vm382, %v358, %v381
        %vm384 = vcmp.eq.f32.partialorder %v358, 0.0
        %v385 = vand.u32 %v358, 2147483648
        %v386 = vsel %vm384, %v385, %v383
        %v387 = vmul.f32 %v343, 6.2831855
        %v388 = vmul.f32 %v344, 6.2831855
        %v389 = vmul.f32 %v345, 6.2831855
        %v390 = vmul.f32 %v346, 6.2831855
        %v391 = vand.u32 2147483647, %v387
        %vm392 = vcmp.le.f32.partialorder %v391, 0.7853982
        %vm393 = vcmp.lt.s32.totalorder %v387, 0
        %v394 = vand.u32 %v387, 2139095040
        %v395 = vshrl.u32 %v394, 23
        %v396 = vsub.s32 %v395, 127
        %v397 = vand.u32 2147483647, %v387
        %v398 = vand.u32 %v397, 8388607
        %v399 = vor.u32 %v398, 8388608
        %v400 = vsub.s32 0, %v399
        %v401 = vadd.s32 %v396, 1
        %vm402 = vcmp.gt.s32.totalorder %v401, 0
        %v403 = vsel %vm402, %v401, 0
        %v404 = vshrl.u32 %v403, 5
        %v405 = vand.u32 %v403, 31
        %v406 = vsub.s32 32, %v405
        %v407 = vshrl.u32 683565275, %v406
        %v408 = vshll.u32 683565275, %v405
        %v409 = vshrl.u32 2475754826, %v406
        %v410 = vor.u32 %v408, %v409
        %v411 = vshll.u32 2475754826, %v405
        %v412 = vshrl.u32 2131351028, %v406
        %v413 = vor.u32 %v411, %v412
        %v414 = vshll.u32 2131351028, %v405
        %v415 = vshrl.u32 2102212464, %v406
        %v416 = vor.u32 %v414, %v415
        %v417 = vshll.u32 2102212464, %v405
        %v418 = vshrl.u32 920167782, %v406
        %v419 = vor.u32 %v417, %v418
        %v420 = vshll.u32 920167782, %v405
        %v421 = vshrl.u32 1326507024, %v406
        %v422 = vor.u32 %v420, %v421
        %vm423 = vcmp.lt.s32.totalorder %v404, 1
        %vm424 = vcmp.lt.s32.totalorder %v404, 2
        %vm425 = vcmp.lt.s32.totalorder %v404, 3
        %vm426 = vcmp.lt.s32.totalorder %v404, 4
        %v427 = vsel %vm423, %v407, %v410
        %v428 = vsel %vm426, %v416, 2102212464
        %v429 = vsel %vm425, %v413, %v428
        %v430 = vsel %vm424, %v427, %v429
        %v431 = vsel %vm423, %v410, %v413
        %v432 = vsel %vm426, %v419, 920167782
        %v433 = vsel %vm425, %v416, %v432
        %v434 = vsel %vm424, %v431, %v433
        %v435 = vsel %vm423, %v413, %v416
        %v436 = vsel %vm426, %v422, 1326507024
        %v437 = vsel %vm425, %v419, %v436
        %v438 = vsel %vm424, %v435, %v437
        %v439 = vshll.u32 %v399, 8
        %v440 = vmul.u32.u64.compose %v439, %v438
        %v441 = vextract.low.u32 %v440
        %v442 = vextract.high.u32 %v440
        %v443 = vmul.u32.u64.compose %v439, %v434
        %v444 = vextract.low.u32 %v443
        %v445 = vextract.high.u32 %v443
        %v446 = vmul.u32 %v439, %v430
        %v447 = vadd.s32 %v442, %v444
        %vm448 = vc.u32 %v442, %v444
        %v449 = vadd.s32 %v445, 1
        %v450 = vsel %vm448, %v449, %v445
        %v451 = vadd.s32 %v446, %v450
        %v452 = vadd.s32 %v451, 536870912
        %v453 = vshrl.u32 %v452, 30
        %v454 = vshll.u32 %v453, 30
        %v455 = vsub.s32 %v451, %v454
        %vm456 = vcmp.lt.s32.totalorder %v455, 0
        %v457 = vsub.s32 0, %v455
        %v458 = vsel %vm456, %v457, %v455
        %v459 = vclz %v458
        %v460 = vsub.s32 %v459, 2
        %vm461 = vcmp.gt.s32.totalorder 0, %v460
        %v462 = vsel %vm461, 0, %v460
        %v463 = vsub.s32 32, %v462
        %v464 = vshll.u32 %v455, %v462
        %v465 = vshrl.u32 %v447, %v463
        %v466 = vor.u32 %v464, %v465
        %v467 = vsub.s32 4294967266, %v462
        %v468 = vadd.s32 %v467, 127
        %v469 = vshll.u32 %v468, 23
        %v470 = vor.u32 4788187, %v469
        %v471 = vand.u32 2147483647, %v470
        %v473 = vcvt.s32.f32 %v466
        %v474 = vmul.f32 %v473, %v471
        %v475 = vxor.u32 %v474, 2147483648
        %v476 = vsel %vm393, %v475, %v474
        %v477 = vsub.s32 4, %v453
        %v478 = vsel %vm393, %v477, %v453
        %v479 = vsel %vm392, %v387, %v476
        %v480 = vsel %vm392, 0, %v478
        %v481 = vcosq.f32.pop %v479
        %v482 = vsinq.f32.pop %v479
        %vm483 = vweird.f32 %v387
        %v484 = vand.u32 %v480, 3
        %vm485 = vcmp.lt.s32.totalorder %v484, 2
        %vm486 = vcmp.eq.s32.totalorder %v484, 0
        %v487 = vxor.u32 %v482, 2147483648
        %v488 = vsel %vm486, %v481, %v487
        %vm489 = vcmp.eq.s32.totalorder %v484, 2
        %v490 = vxor.u32 %v481, 2147483648
        %v491 = vsel %vm489, %v490, %v482
        %v492 = vsel %vm485, %v488, %v491
        %v493 = vsel %vm483, nan, %v492
        %v494 = vand.u32 2147483647, %v388
        %vm495 = vcmp.le.f32.partialorder %v494, 0.7853982
        %vm496 = vcmp.lt.s32.totalorder %v388, 0
        %v497 = vand.u32 %v388, 2139095040
        %v498 = vshrl.u32 %v497, 23
        %v499 = vsub.s32 %v498, 127
        %v500 = vand.u32 2147483647, %v388
        %v501 = vand.u32 %v500, 8388607
        %v502 = vor.u32 %v501, 8388608
        %v503 = vsub.s32 0, %v502
        %v504 = vadd.s32 %v499, 1
        %vm505 = vcmp.gt.s32.totalorder %v504, 0
        %v506 = vsel %vm505, %v504, 0
        %v507 = vshrl.u32 %v506, 5
        %v508 = vand.u32 %v506, 31
        %v509 = vsub.s32 32, %v508
        %v510 = vshrl.u32 683565275, %v509
        %v511 = vshll.u32 683565275, %v508
        %v512 = vshrl.u32 2475754826, %v509
        %v513 = vor.u32 %v511, %v512
        %v514 = vshll.u32 2475754826, %v508
        %v515 = vshrl.u32 2131351028, %v509
        %v516 = vor.u32 %v514, %v515
        %v517 = vshll.u32 2131351028, %v508
        %v518 = vshrl.u32 2102212464, %v509
        %v519 = vor.u32 %v517, %v518
        %v520 = vshll.u32 2102212464, %v508
        %v521 = vshrl.u32 920167782, %v509
        %v522 = vor.u32 %v520, %v521
        %v523 = vshll.u32 920167782, %v508
        %v524 = vshrl.u32 1326507024, %v509
        %v525 = vor.u32 %v523, %v524
        %vm526 = vcmp.lt.s32.totalorder %v507, 1
        %vm527 = vcmp.lt.s32.totalorder %v507, 2
        %vm528 = vcmp.lt.s32.totalorder %v507, 3
        %vm529 = vcmp.lt.s32.totalorder %v507, 4
        %v530 = vsel %vm526, %v510, %v513
        %v531 = vsel %vm529, %v519, 2102212464
        %v532 = vsel %vm528, %v516, %v531
        %v533 = vsel %vm527, %v530, %v532
        %v534 = vsel %vm526, %v513, %v516
        %v535 = vsel %vm529, %v522, 920167782
        %v536 = vsel %vm528, %v519, %v535
        %v537 = vsel %vm527, %v534, %v536
        %v538 = vsel %vm526, %v516, %v519
        %v539 = vsel %vm529, %v525, 1326507024
        %v540 = vsel %vm528, %v522, %v539
        %v541 = vsel %vm527, %v538, %v540
        %v542 = vshll.u32 %v502, 8
        %v543 = vmul.u32.u64.compose %v542, %v541
        %v544 = vextract.low.u32 %v543
        %v545 = vextract.high.u32 %v543
        %v546 = vmul.u32.u64.compose %v542, %v537
        %v547 = vextract.low.u32 %v546
        %v548 = vextract.high.u32 %v546
        %v549 = vmul.u32 %v542, %v533
        %v550 = vadd.s32 %v545, %v547
        %vm551 = vc.u32 %v545, %v547
        %v552 = vadd.s32 %v548, 1
        %v553 = vsel %vm551, %v552, %v548
        %v554 = vadd.s32 %v549, %v553
        %v555 = vadd.s32 %v554, 536870912
        %v556 = vshrl.u32 %v555, 30
        %v557 = vshll.u32 %v556, 30
        %v558 = vsub.s32 %v554, %v557
        %vm559 = vcmp.lt.s32.totalorder %v558, 0
        %v560 = vsub.s32 0, %v558
        %v561 = vsel %vm559, %v560, %v558
        %v562 = vclz %v561
        %v563 = vsub.s32 %v562, 2
        %vm564 = vcmp.gt.s32.totalorder 0, %v563
        %v565 = vsel %vm564, 0, %v563
        %v566 = vsub.s32 32, %v565
        %v567 = vshll.u32 %v558, %v565
        %v568 = vshrl.u32 %v550, %v566
        %v569 = vor.u32 %v567, %v568
        %v570 = vsub.s32 4294967266, %v565
        %v571 = vadd.s32 %v570, 127
        %v572 = vshll.u32 %v571, 23
        %v573 = vor.u32 4788187, %v572
        %v574 = vand.u32 2147483647, %v573
        %v576 = vcvt.s32.f32 %v569
        %v577 = vmul.f32 %v576, %v574
        %v578 = vxor.u32 %v577, 2147483648
        %v579 = vsel %vm496, %v578, %v577
        %v580 = vsub.s32 4, %v556
        %v581 = vsel %vm496, %v580, %v556
        %v582 = vsel %vm495, %v388, %v579
        %v583 = vsel %vm495, 0, %v581
        %v584 = vcosq.f32.pop %v582
        %v585 = vsinq.f32.pop %v582
        %vm586 = vweird.f32 %v388
        %v587 = vand.u32 %v583, 3
        %vm588 = vcmp.lt.s32.totalorder %v587, 2
        %vm589 = vcmp.eq.s32.totalorder %v587, 0
        %v590 = vxor.u32 %v585, 2147483648
        %v591 = vsel %vm589, %v584, %v590
        %vm592 = vcmp.eq.s32.totalorder %v587, 2
        %v593 = vxor.u32 %v584, 2147483648
        %v594 = vsel %vm592, %v593, %v585
        %v595 = vsel %vm588, %v591, %v594
        %v596 = vsel %vm586, nan, %v595
        %v597 = vand.u32 2147483647, %v389
        %vm598 = vcmp.le.f32.partialorder %v597, 0.7853982
        %vm599 = vcmp.lt.s32.totalorder %v389, 0
        %v600 = vand.u32 %v389, 2139095040
        %v601 = vshrl.u32 %v600, 23
        %v602 = vsub.s32 %v601, 127
        %v603 = vand.u32 2147483647, %v389
        %v604 = vand.u32 %v603, 8388607
        %v605 = vor.u32 %v604, 8388608
        %v606 = vsub.s32 0, %v605
        %v607 = vadd.s32 %v602, 1
        %vm608 = vcmp.gt.s32.totalorder %v607, 0
        %v609 = vsel %vm608, %v607, 0
        %v610 = vshrl.u32 %v609, 5
        %v611 = vand.u32 %v609, 31
        %v612 = vsub.s32 32, %v611
        %v613 = vshrl.u32 683565275, %v612
        %v614 = vshll.u32 683565275, %v611
        %v615 = vshrl.u32 2475754826, %v612
        %v616 = vor.u32 %v614, %v615
        %v617 = vshll.u32 2475754826, %v611
        %v618 = vshrl.u32 2131351028, %v612
        %v619 = vor.u32 %v617, %v618
        %v620 = vshll.u32 2131351028, %v611
        %v621 = vshrl.u32 2102212464, %v612
        %v622 = vor.u32 %v620, %v621
        %v623 = vshll.u32 2102212464, %v611
        %v624 = vshrl.u32 920167782, %v612
        %v625 = vor.u32 %v623, %v624
        %v626 = vshll.u32 920167782, %v611
        %v627 = vshrl.u32 1326507024, %v612
        %v628 = vor.u32 %v626, %v627
        %vm629 = vcmp.lt.s32.totalorder %v610, 1
        %vm630 = vcmp.lt.s32.totalorder %v610, 2
        %vm631 = vcmp.lt.s32.totalorder %v610, 3
        %vm632 = vcmp.lt.s32.totalorder %v610, 4
        %v633 = vsel %vm629, %v613, %v616
        %v634 = vsel %vm632, %v622, 2102212464
        %v635 = vsel %vm631, %v619, %v634
        %v636 = vsel %vm630, %v633, %v635
        %v637 = vsel %vm629, %v616, %v619
        %v638 = vsel %vm632, %v625, 920167782
        %v639 = vsel %vm631, %v622, %v638
        %v640 = vsel %vm630, %v637, %v639
        %v641 = vsel %vm629, %v619, %v622
        %v642 = vsel %vm632, %v628, 1326507024
        %v643 = vsel %vm631, %v625, %v642
        %v644 = vsel %vm630, %v641, %v643
        %v645 = vshll.u32 %v605, 8
        %v646 = vmul.u32.u64.compose %v645, %v644
        %v647 = vextract.low.u32 %v646
        %v648 = vextract.high.u32 %v646
        %v649 = vmul.u32.u64.compose %v645, %v640
        %v650 = vextract.low.u32 %v649
        %v651 = vextract.high.u32 %v649
        %v652 = vmul.u32 %v645, %v636
        %v653 = vadd.s32 %v648, %v650
        %vm654 = vc.u32 %v648, %v650
        %v655 = vadd.s32 %v651, 1
        %v656 = vsel %vm654, %v655, %v651
        %v657 = vadd.s32 %v652, %v656
        %v658 = vadd.s32 %v657, 536870912
        %v659 = vshrl.u32 %v658, 30
        %v660 = vshll.u32 %v659, 30
        %v661 = vsub.s32 %v657, %v660
        %vm662 = vcmp.lt.s32.totalorder %v661, 0
        %v663 = vsub.s32 0, %v661
        %v664 = vsel %vm662, %v663, %v661
        %v665 = vclz %v664
        %v666 = vsub.s32 %v665, 2
        %vm667 = vcmp.gt.s32.totalorder 0, %v666
        %v668 = vsel %vm667, 0, %v666
        %v669 = vsub.s32 32, %v668
        %v670 = vshll.u32 %v661, %v668
        %v671 = vshrl.u32 %v653, %v669
        %v672 = vor.u32 %v670, %v671
        %v673 = vsub.s32 4294967266, %v668
        %v674 = vadd.s32 %v673, 127
        %v675 = vshll.u32 %v674, 23
        %v676 = vor.u32 4788187, %v675
        %v677 = vand.u32 2147483647, %v676
        %v679 = vcvt.s32.f32 %v672
        %v680 = vmul.f32 %v679, %v677
        %v681 = vxor.u32 %v680, 2147483648
        %v682 = vsel %vm599, %v681, %v680
        %v683 = vsub.s32 4, %v659
        %v684 = vsel %vm599, %v683, %v659
        %v685 = vsel %vm598, %v389, %v682
        %v686 = vsel %vm598, 0, %v684
        %v687 = vcosq.f32.pop %v685
        %v688 = vsinq.f32.pop %v685
        %vm689 = vweird.f32 %v389
        %v690 = vand.u32 %v686, 3
        %vm691 = vcmp.lt.s32.totalorder %v690, 2
        %vm692 = vcmp.eq.s32.totalorder %v690, 0
        %v693 = vxor.u32 %v688, 2147483648
        %v694 = vsel %vm692, %v687, %v693
        %vm695 = vcmp.eq.s32.totalorder %v690, 2
        %v696 = vxor.u32 %v687, 2147483648
        %v697 = vsel %vm695, %v696, %v688
        %v698 = vsel %vm691, %v694, %v697
        %v699 = vsel %vm689, nan, %v698
        %v700 = vand.u32 2147483647, %v390
        %vm701 = vcmp.le.f32.partialorder %v700, 0.7853982
        %vm702 = vcmp.lt.s32.totalorder %v390, 0
        %v703 = vand.u32 %v390, 2139095040
        %v704 = vshrl.u32 %v703, 23
        %v705 = vsub.s32 %v704, 127
        %v706 = vand.u32 2147483647, %v390
        %v707 = vand.u32 %v706, 8388607
        %v708 = vor.u32 %v707, 8388608
        %v709 = vsub.s32 0, %v708
        %v710 = vadd.s32 %v705, 1
        %vm711 = vcmp.gt.s32.totalorder %v710, 0
        %v712 = vsel %vm711, %v710, 0
        %v713 = vshrl.u32 %v712, 5
        %v714 = vand.u32 %v712, 31
        %v715 = vsub.s32 32, %v714
        %v716 = vshrl.u32 683565275, %v715
        %v717 = vshll.u32 683565275, %v714
        %v718 = vshrl.u32 2475754826, %v715
        %v719 = vor.u32 %v717, %v718
        %v720 = vshll.u32 2475754826, %v714
        %v721 = vshrl.u32 2131351028, %v715
        %v722 = vor.u32 %v720, %v721
        %v723 = vshll.u32 2131351028, %v714
        %v724 = vshrl.u32 2102212464, %v715
        %v725 = vor.u32 %v723, %v724
        %v726 = vshll.u32 2102212464, %v714
        %v727 = vshrl.u32 920167782, %v715
        %v728 = vor.u32 %v726, %v727
        %v729 = vshll.u32 920167782, %v714
        %v730 = vshrl.u32 1326507024, %v715
        %v731 = vor.u32 %v729, %v730
        %vm732 = vcmp.lt.s32.totalorder %v713, 1
        %vm733 = vcmp.lt.s32.totalorder %v713, 2
        %vm734 = vcmp.lt.s32.totalorder %v713, 3
        %vm735 = vcmp.lt.s32.totalorder %v713, 4
        %v736 = vsel %vm732, %v716, %v719
        %v737 = vsel %vm735, %v725, 2102212464
        %v738 = vsel %vm734, %v722, %v737
        %v739 = vsel %vm733, %v736, %v738
        %v740 = vsel %vm732, %v719, %v722
        %v741 = vsel %vm735, %v728, 920167782
        %v742 = vsel %vm734, %v725, %v741
        %v743 = vsel %vm733, %v740, %v742
        %v744 = vsel %vm732, %v722, %v725
        %v745 = vsel %vm735, %v731, 1326507024
        %v746 = vsel %vm734, %v728, %v745
        %v747 = vsel %vm733, %v744, %v746
        %v748 = vshll.u32 %v708, 8
        %v749 = vmul.u32.u64.compose %v748, %v747
        %v750 = vextract.low.u32 %v749
        %v751 = vextract.high.u32 %v749
        %v752 = vmul.u32.u64.compose %v748, %v743
        %v753 = vextract.low.u32 %v752
        %v754 = vextract.high.u32 %v752
        %v755 = vmul.u32 %v748, %v739
        %v756 = vadd.s32 %v751, %v753
        %vm757 = vc.u32 %v751, %v753
        %v758 = vadd.s32 %v754, 1
        %v759 = vsel %vm757, %v758, %v754
        %v760 = vadd.s32 %v755, %v759
        %v761 = vadd.s32 %v760, 536870912
        %v762 = vshrl.u32 %v761, 30
        %v763 = vshll.u32 %v762, 30
        %v764 = vsub.s32 %v760, %v763
        %vm765 = vcmp.lt.s32.totalorder %v764, 0
        %v766 = vsub.s32 0, %v764
        %v767 = vsel %vm765, %v766, %v764
        %v768 = vclz %v767
        %v769 = vsub.s32 %v768, 2
        %vm770 = vcmp.gt.s32.totalorder 0, %v769
        %v771 = vsel %vm770, 0, %v769
        %v772 = vsub.s32 32, %v771
        %v773 = vshll.u32 %v764, %v771
        %v774 = vshrl.u32 %v756, %v772
        %v775 = vor.u32 %v773, %v774
        %v776 = vsub.s32 4294967266, %v771
        %v777 = vadd.s32 %v776, 127
        %v778 = vshll.u32 %v777, 23
        %v779 = vor.u32 4788187, %v778
        %v780 = vand.u32 2147483647, %v779
        %v782 = vcvt.s32.f32 %v775
        %v783 = vmul.f32 %v782, %v780
        %v784 = vxor.u32 %v783, 2147483648
        %v785 = vsel %vm702, %v784, %v783
        %v786 = vsub.s32 4, %v762
        %v787 = vsel %vm702, %v786, %v762
        %v788 = vsel %vm701, %v390, %v785
        %v789 = vsel %vm701, 0, %v787
        %v790 = vcosq.f32.pop %v788
        %v791 = vsinq.f32.pop %v788
        %vm792 = vweird.f32 %v390
        %v793 = vand.u32 %v789, 3
        %vm794 = vcmp.lt.s32.totalorder %v793, 2
        %vm795 = vcmp.eq.s32.totalorder %v793, 0
        %v796 = vxor.u32 %v791, 2147483648
        %v797 = vsel %vm795, %v790, %v796
        %vm798 = vcmp.eq.s32.totalorder %v793, 2
        %v799 = vxor.u32 %v790, 2147483648
        %v800 = vsel %vm798, %v799, %v791
        %v801 = vsel %vm794, %v797, %v800
        %v802 = vsel %vm792, nan, %v801
        %v803 = vmul.f32 %v365, %v493
        %v804 = vmul.f32 %v372, %v596
        %v805 = vmul.f32 %v379, %v699
        %v806 = vmul.f32 %v386, %v802
        %s807 = sld [smem:[#allocation4]]
        %s808 = sld [smem:[#allocation4 + $0x1]]
        %v809 = vmax.f32 %v207, 0.0
        %v810 = vmax.f32 %v208, 0.0
        %v811 = vmax.f32 %v209, 0.0
        %v812 = vmax.f32 %v210, 0.0
        %s813 = smul.f32 %s807, %s807
        %v814 = vstv %s813
        %v815 = vmul.f32 %v809, %v814
        %v816 = vmul.f32 %v810, %v814
        %v817 = vmul.f32 %v811, %v814
        %v818 = vmul.f32 %v812, %v814
        %s819 = smul.f32 %s808, %s808
        %v820 = vstv %s819
        %v821 = vadd.f32 %v815, %v820
        %v822 = vadd.f32 %v816, %v820
        %v823 = vadd.f32 %v817, %v820
        %v824 = vadd.f32 %v818, %v820
        %v825 = vrsqrt.pop %v821
        %v826 = vmul.f32 %v821, %v825
        %vm827 = vcmp.eq.f32.partialorder %v821, inf
        %v828 = vsel %vm827, %v821, %v826
        %vm829 = vcmp.eq.f32.partialorder %v821, 0.0
        %v830 = vand.u32 %v821, 2147483648
        %v831 = vsel %vm829, %v830, %v828
        %v832 = vrsqrt.pop %v822
        %v833 = vmul.f32 %v822, %v832
        %vm834 = vcmp.eq.f32.partialorder %v822, inf
        %v835 = vsel %vm834, %v822, %v833
        %vm836 = vcmp.eq.f32.partialorder %v822, 0.0
        %v837 = vand.u32 %v822, 2147483648
        %v838 = vsel %vm836, %v837, %v835
        %v839 = vrsqrt.pop %v823
        %v840 = vmul.f32 %v823, %v839
        %vm841 = vcmp.eq.f32.partialorder %v823, inf
        %v842 = vsel %vm841, %v823, %v840
        %vm843 = vcmp.eq.f32.partialorder %v823, 0.0
        %v844 = vand.u32 %v823, 2147483648
        %v845 = vsel %vm843, %v844, %v842
        %v846 = vrsqrt.pop %v824
        %v847 = vmul.f32 %v824, %v846
        %vm848 = vcmp.eq.f32.partialorder %v824, inf
        %v849 = vsel %vm848, %v824, %v847
        %vm850 = vcmp.eq.f32.partialorder %v824, 0.0
        %v851 = vand.u32 %v824, 2147483648
        %v852 = vsel %vm850, %v851, %v849
        %v853 = vmul.f32 %v831, %v803
        %v854 = vmul.f32 %v838, %v804
        %v855 = vmul.f32 %v845, %v805
        %v856 = vmul.f32 %v852, %v806
        %v857 = vadd.f32 %v207, %v853
        %v858 = vadd.f32 %v208, %v854
        %v859 = vadd.f32 %v209, %v855
        %v860 = vadd.f32 %v210, %v856
        %v861 = vmax.f32 %v857, 0.0
        %v862 = vmax.f32 %v858, 0.0
        %v863 = vmax.f32 %v859, 0.0
        %v864 = vmax.f32 %v860, 0.0
        %v865 = vmin.f32 %v861, 1.0
        %v866 = vmin.f32 %v862, 1.0
        %v867 = vmin.f32 %v863, 1.0
        %v868 = vmin.f32 %v864, 1.0
        %869 = vst [vmem:[%s173] sm:$0xff] %v865
        %870 = vst [vmem:[%s173 + $0x8] sm:$0xff] %v866
        %871 = vst [vmem:[%s173 + $0x10] sm:$0xff] %v867
        %872 = vst [vmem:[%s173 + $0x18] sm:$0xff] %v868
        %s873 = sand.u32 %s88, 1
        %s874 = scalar_lea.sflag [#allocation7], %s873
        %s875 = sand.u32 %s88, 1
        %s876 = smul.addr %s875, 32
        %s877 = scalar_lea.vmem [#allocation8], %s876
        // Predicated region
        $region29: #{tpu_custom_call.1} parent=23 // pred_check
          %p878 = pneg %p98
        $region30: #{tpu_custom_call.1} parent=23 // pred_check_branch
          %880 = sbr.rel (%p878) target = $region32
        $region31: #{tpu_custom_call.1} parent=23 // pred_region
          %s881 = smul.u32 4, %s33
          %s883 = ssub.s32 512, 512
          %884 = vsyncadd %s874, %s883
          %s885 = sadd.s32 %s34, %s881
          %s886 = smul.addr %s32, 4
          %s887 = sadd.s32 %s885, %s886
          %s888 = smul.addr %s887, 128
          %s889 = scalar_lea.hbm %s3, %s888
          %s890 = sshll.u32 %s877, 4
          %s891 = int_to_ptr.vmem [resolvable:$true] %s890
          %896 = dma.vmem_to_hbm [thread:$0]  %s891, 512, %s889, %s874, 128, 128, 8
        $region32: #{tpu_custom_call.1} parent=23 // pred_fallthru
          _
      $region24: #{tpu_custom_call.1} parent=5 // pred_fallthru
        _
      %p897 = scmp.le.s32.totalorder 2, %s22
      // Predicated region
      $region33: #{tpu_custom_call.1} parent=5 // pred_check
        %p898 = pneg %p897
      $region34: #{tpu_custom_call.1} parent=5 // pred_check_branch
        %900 = sbr.rel (%p898) target = $region36
      $region35: #{tpu_custom_call.1} parent=5 // pred_region
        %s901 = ssub.s32 %s22, 2
        // Predicated region
        $region37: #{tpu_custom_call.1} parent=35 // pred_check
          %p902 = pneg %p104
        $region38: #{tpu_custom_call.1} parent=35 // pred_check_branch
          %904 = sbr.rel (%p902) target = $region40
        $region39: #{tpu_custom_call.1} parent=35 // pred_region
          %s905 = sand.u32 %s89, 1
          %s906 = scalar_lea.sflag [#allocation7], %s905
          %s907 = sand.u32 %s89, 1
          %s908 = smul.addr %s907, 32
          %s909 = scalar_lea.vmem [#allocation8], %s908
          %910 = dma.done %s906, 512
        $region40: #{tpu_custom_call.1} parent=35 // pred_fallthru
          _
      $region36: #{tpu_custom_call.1} parent=5 // pred_fallthru
        _
    $region6: #{tpu_custom_call.1} parent=1 // loop_footer
      %s26 = sadd.s32 1, %s22
    $region7: #{tpu_custom_call.1} parent=1 // loop_footer_branch
      %21 = sbr.rel target = $region3
    $region8: #{tpu_custom_call.1} parent=1 // loop_exit
      _
    %911 = vsyncpa [#allocation6], 1
    %s912 = scalar_lea.sflag [#allocation6], 1
    %913 = vsyncpa %s912, 1
    %914 = vsyncpa [#allocation7], 1
    %s915 = scalar_lea.sflag [#allocation7], 1
    %916 = vsyncpa %s915, 1

</llo_original>
